<compile_context>
chip_gen: v7x
topology: tpu7x:2x2x1
jax: 0.10.0
libtpu: 0.0.40
codegen_flags: <defaults>
</compile_context>

<pallas_src>
import functools

import jax
import jax.numpy as jnp
from jax.experimental import pallas as pl
from jax.experimental.pallas import tpu as pltpu


def _round_up(x, m):
    return ((x + m - 1) // m) * m


# --------------------------------------------------------------------------- #
# Kernel
# --------------------------------------------------------------------------- #
def _actor_kernel(*refs, action_dim, n_action, n_layers):
    """MLP trunk (bf16 matmuls, f32 accum) + segmented log-softmax, one tile."""
    obs_ref = refs[0]
    out_ref = refs[-1]
    wb_refs = refs[1:-1]          # interleaved (w, b) pairs, weights bf16, biases f32

    # ---- trunk: Linear (+ReLU except last) ---------------------------------
    h = obs_ref[...]              # [TB, obs_dim] (bf16)
    for layer in range(n_layers):
        w = wb_refs[2 * layer][...]          # [in, out]   bf16
        b = wb_refs[2 * layer + 1][...]      # [1,  out]   f32
        h = jnp.dot(h.astype(w.dtype), w,
                    preferred_element_type=jnp.float32) + b
        if layer < n_layers - 1:
            h = jnp.maximum(h, 0.0)
    # Last layer already includes the 1/temperature fold and zero-padded
    # columns up to the 128-lane width.
    logits = h                                 # [TB, a_pad] f32

    tb, a_pad = logits.shape
    n_groups = action_dim // n_action
    lane = jax.lax.broadcasted_iota(jnp.int32, (tb, a_pad), 1)

    # Per-group max, broadcast back to full lane width via selects.
    m_full = jnp.zeros_like(logits)
    for g in range(n_groups):
        lo = g * n_action
        in_g = (lane >= lo) & (lane < lo + n_action)
        m_g = jnp.max(logits[:, lo:lo + n_action], axis=-1, keepdims=True)
        m_full = jnp.where(in_g, m_g, m_full)

    z = logits - m_full            # pad lanes: 0 - 0 = 0 (harmless)
    e = jnp.exp(z)                 # one full-width exp

    # Per-group log-sum-exp, broadcast back to full lane width.
    lse_full = jnp.zeros_like(logits)
    for g in range(n_groups):
        lo = g * n_action
        in_g = (lane >= lo) & (lane < lo + n_action)
        s_g = jnp.sum(e[:, lo:lo + n_action], axis=-1, keepdims=True)
        lse_full = jnp.where(in_g, jnp.log(s_g), lse_full)

    # Single lane-dense, unmasked full-tile store (pad lanes set to 0).
    out_ref[...] = jnp.where(lane < action_dim, z - lse_full, 0.0)


# --------------------------------------------------------------------------- #
# Host-side parameter preparation (done once, not per call)
# --------------------------------------------------------------------------- #
def prepare_params(params, *, action_dim, temperature=1.0,
                   compute_dtype=jnp.bfloat16):
    """Cast weights to bf16, fold 1/temperature into the output layer,
    zero-pad the output layer to a 128-lane-aligned width, reshape biases."""
    if float(temperature) == 0.0:
        raise ValueError("temperature must be non-zero")
    ws = list(params[0::2])
    bs = list(params[1::2])

    inv_t = jnp.float32(1.0 / float(temperature))
    a_pad = _round_up(action_dim, 128)
    pad = a_pad - action_dim
    ws[-1] = jnp.pad(ws[-1] * inv_t, ((0, 0), (0, pad)))
    bs[-1] = jnp.pad(bs[-1] * inv_t, ((0, pad),))

    prepped = []
    for w, b in zip(ws, bs):
        prepped.append(w.astype(compute_dtype))
        prepped.append(b.astype(jnp.float32).reshape(1, -1))
    return tuple(prepped)


# --------------------------------------------------------------------------- #
# Wrapper
# --------------------------------------------------------------------------- #
def multi_softmax_actor_forward(obs, prepped, *, action_dim, n_action,
                                block_rows=512):
    """Returns normalized log-probs, shape (*obs.shape[:-1], action_dim//n_action, n_action)."""
    assert action_dim % n_action == 0, "action_dim must be divisible by n_action"
    batch_shape = obs.shape[:-1]
    obs_dim = obs.shape[-1]
    n_layers = len(prepped) // 2
    a_pad = prepped[-1].shape[-1]            # padded (128-aligned) action dim

    obs2d = obs.reshape(-1, obs_dim).astype(prepped[0].dtype)   # bf16 stream
    bsz = obs2d.shape[0]

    # Batch tile: multiple of 8 sublanes, capped at block_rows (>=512 reaches
    # ~85% of HBM roofline for the streamed I/O of this mem-light MLP).
    tb = min(block_rows, _round_up(max(bsz, 1), 8))
    bsz_pad = _round_up(bsz, tb)
    if bsz_pad != bsz:
        obs2d = jnp.pad(obs2d, ((0, bsz_pad - bsz), (0, 0)))

    kernel = functools.partial(_actor_kernel, action_dim=action_dim,
                               n_action=n_action, n_layers=n_layers)

    in_specs = [pl.BlockSpec((tb, obs_dim), lambda i: (i, 0))]   # streamed obs
    for p in prepped:                                            # resident params
        in_specs.append(pl.BlockSpec(p.shape, lambda i: (0, 0)))

    out2d = pl.pallas_call(
        kernel,
        out_shape=jax.ShapeDtypeStruct((bsz_pad, a_pad), jnp.float32),
        grid=(bsz_pad // tb,),
        in_specs=in_specs,
        out_specs=pl.BlockSpec((tb, a_pad), lambda i: (i, 0)),
        compiler_params=pltpu.CompilerParams(
            dimension_semantics=("parallel",),     # megacore split on v7x
            vmem_limit_bytes=32 * 1024 * 1024,     # well under v7x's 64 MiB
        ),
    )(obs2d, *prepped)

    out = out2d[:bsz, :action_dim]
    return out.reshape(*batch_shape, action_dim // n_action, n_action)


# --------------------------------------------------------------------------- #
# Reference + synthetic params
# --------------------------------------------------------------------------- #
def _reference(obs, params, *, action_dim, n_action, temperature=1.0):
    ws = params[0::2]
    bs = params[1::2]
    h = obs.reshape(-1, obs.shape[-1])
    for i, (w, b) in enumerate(zip(ws, bs)):
        h = h @ w + b
        if i < len(ws) - 1:
            h = jnp.maximum(h, 0.0)
    logits = (h / temperature).reshape(*obs.shape[:-1],
                                       action_dim // n_action, n_action)
    return jax.nn.log_softmax(logits, axis=-1)


def init_params(key, obs_dim, hidden_dim, action_dim, hidden_depth=2):
    """Deterministic synthetic parameters, shapes match util.mlp."""
    dims = [obs_dim] + [hidden_dim] * hidden_depth + [action_dim]
    keys = jax.random.split(key, 2 * (len(dims) - 1))
    scale = 0.1
    params = []
    for l in range(len(dims) - 1):
        params.append(scale * jax.random.normal(keys[2 * l],
                                                (dims[l], dims[l + 1]), jnp.float32))
        params.append(scale * jax.random.normal(keys[2 * l + 1],
                                                (dims[l + 1],), jnp.float32))
    return tuple(params)


if __name__ == "__main__":
    # Small shapes consistent with the module: hidden_depth=2.
    obs_dim, hidden_dim, hidden_depth = 32, 32, 2
    action_dim, n_action = 8, 4          # -> 2 categorical groups of 4 actions
    batch_shape = (2, 4)
    temperature = 1.0

    key = jax.random.PRNGKey(0)
    k_obs, k_par = jax.random.split(key)
    obs = jax.random.normal(k_obs, (*batch_shape, obs_dim), jnp.float32)
    params = init_params(k_par, obs_dim, hidden_dim, action_dim, hidden_depth)

    prepped = prepare_params(params, action_dim=action_dim, temperature=temperature)
    log_probs = multi_softmax_actor_forward(
        obs, prepped, action_dim=action_dim, n_action=n_action)
    log_probs = jax.block_until_ready(log_probs)

    assert log_probs.shape == (*batch_shape, action_dim // n_action, n_action)
    # Sanity 1: each group's probabilities sum to 1 (exact kernel-side f32 math).
    probs_sum = jnp.sum(jnp.exp(log_probs), axis=-1)
    assert bool(jnp.all(jnp.abs(probs_sum - 1.0) < 1e-4))
    # Sanity 2: matches a pure-JAX f32 reference within bf16-matmul tolerance.
    ref = _reference(obs, params, action_dim=action_dim, n_action=n_action,
                     temperature=temperature)
    assert bool(jnp.allclose(log_probs, ref, atol=2e-2, rtol=2e-2))

    # TODO(synk): Categorical.sample() (select_action) is not implemented here;
    # the kernel returns the distribution's normalized log-probs.
    print("KERNEL_OK")
</pallas_src>

<mosaic_0001>
module attributes {stable_mosaic.version = 11 : i64} {
  func.func @_actor_kernel(%arg0: i32, %arg1: memref<8x32xbf16, #tpu.memory_space<vmem>>, %arg2: memref<32x32xbf16, #tpu.memory_space<vmem>>, %arg3: memref<1x32xf32, #tpu.memory_space<vmem>>, %arg4: memref<32x32xbf16, #tpu.memory_space<vmem>>, %arg5: memref<1x32xf32, #tpu.memory_space<vmem>>, %arg6: memref<32x128xbf16, #tpu.memory_space<vmem>>, %arg7: memref<1x128xf32, #tpu.memory_space<vmem>>, %arg8: memref<8x128xf32, #tpu.memory_space<vmem>>) attributes {dimension_semantics = [#tpu.dimension_semantics<parallel>], iteration_bounds = array<i64: 1>, scalar_prefetch = 0 : i64, scratch_operands = 0 : i64, tpu.core_type = #tpu.core_type<tc>, window_params = [{transform_indices = @transform_0, window_bounds = array<i64: 8, 32>}, {pipeline_mode = #tpu.pipeline_mode<synchronous>, transform_indices = @transform_1, window_bounds = array<i64: 32, 32>}, {pipeline_mode = #tpu.pipeline_mode<synchronous>, transform_indices = @transform_2, window_bounds = array<i64: 1, 32>}, {pipeline_mode = #tpu.pipeline_mode<synchronous>, transform_indices = @transform_3, window_bounds = array<i64: 32, 32>}, {pipeline_mode = #tpu.pipeline_mode<synchronous>, transform_indices = @transform_4, window_bounds = array<i64: 1, 32>}, {pipeline_mode = #tpu.pipeline_mode<synchronous>, transform_indices = @transform_5, window_bounds = array<i64: 32, 128>}, {pipeline_mode = #tpu.pipeline_mode<synchronous>, transform_indices = @transform_6, window_bounds = array<i64: 1, 128>}, {transform_indices = @transform_7, window_bounds = array<i64: 8, 128>}]} {
    %c0 = arith.constant 0 : index
    %c0_0 = arith.constant 0 : index
    %0 = vector.load %arg1[%c0, %c0_0] : memref<8x32xbf16, #tpu.memory_space<vmem>>, vector<8x32xbf16>
    %c0_1 = arith.constant 0 : index
    %c0_2 = arith.constant 0 : index
    %1 = vector.load %arg2[%c0_1, %c0_2] : memref<32x32xbf16, #tpu.memory_space<vmem>>, vector<32x32xbf16>
    %c0_3 = arith.constant 0 : index
    %c0_4 = arith.constant 0 : index
    %2 = vector.load %arg3[%c0_3, %c0_4] : memref<1x32xf32, #tpu.memory_space<vmem>>, vector<1x32xf32>
    %cst = arith.constant dense<0.000000e+00> : vector<8x32xf32>
    %3 = tpu.matmul %0, %1, %cst {dimension_numbers = #tpu.dot_dimension_numbers<[1], [0], [0], [1], [0, 0, 1, 1], [], []>} : vector<8x32xbf16>, vector<32x32xbf16>, vector<8x32xf32> -> vector<8x32xf32>
    %4 = vector.broadcast %2 : vector<1x32xf32> to vector<8x32xf32>
    %5 = arith.addf %3, %4 : vector<8x32xf32>
    %cst_5 = arith.constant 0.000000e+00 : f32
    %6 = vector.broadcast %cst_5 : f32 to vector<8x32xf32>
    %7 = arith.maximumf %5, %6 : vector<8x32xf32>
    %c0_6 = arith.constant 0 : index
    %c0_7 = arith.constant 0 : index
    %8 = vector.load %arg4[%c0_6, %c0_7] : memref<32x32xbf16, #tpu.memory_space<vmem>>, vector<32x32xbf16>
    %c0_8 = arith.constant 0 : index
    %c0_9 = arith.constant 0 : index
    %9 = vector.load %arg5[%c0_8, %c0_9] : memref<1x32xf32, #tpu.memory_space<vmem>>, vector<1x32xf32>
    %10 = arith.truncf %7 : vector<8x32xf32> to vector<8x32xbf16>
    %cst_10 = arith.constant dense<0.000000e+00> : vector<8x32xf32>
    %11 = tpu.matmul %10, %8, %cst_10 {dimension_numbers = #tpu.dot_dimension_numbers<[1], [0], [0], [1], [0, 0, 1, 1], [], []>} : vector<8x32xbf16>, vector<32x32xbf16>, vector<8x32xf32> -> vector<8x32xf32>
    %12 = vector.broadcast %9 : vector<1x32xf32> to vector<8x32xf32>
    %13 = arith.addf %11, %12 : vector<8x32xf32>
    %cst_11 = arith.constant 0.000000e+00 : f32
    %14 = vector.broadcast %cst_11 : f32 to vector<8x32xf32>
    %15 = arith.maximumf %13, %14 : vector<8x32xf32>
    %c0_12 = arith.constant 0 : index
    %c0_13 = arith.constant 0 : index
    %16 = vector.load %arg6[%c0_12, %c0_13] : memref<32x128xbf16, #tpu.memory_space<vmem>>, vector<32x128xbf16>
    %c0_14 = arith.constant 0 : index
    %c0_15 = arith.constant 0 : index
    %17 = vector.load %arg7[%c0_14, %c0_15] : memref<1x128xf32, #tpu.memory_space<vmem>>, vector<1x128xf32>
    %18 = arith.truncf %15 : vector<8x32xf32> to vector<8x32xbf16>
    %cst_16 = arith.constant dense<0.000000e+00> : vector<8x128xf32>
    %19 = tpu.matmul %18, %16, %cst_16 {dimension_numbers = #tpu.dot_dimension_numbers<[1], [0], [0], [1], [0, 0, 1, 1], [], []>} : vector<8x32xbf16>, vector<32x128xbf16>, vector<8x128xf32> -> vector<8x128xf32>
    %20 = vector.broadcast %17 : vector<1x128xf32> to vector<8x128xf32>
    %21 = arith.addf %19, %20 : vector<8x128xf32>
    %22 = tpu.iota {dimensions = array<i32: 1>} : vector<8x128xi32>
    %cst_17 = arith.constant 0.000000e+00 : f32
    %23 = vector.broadcast %cst_17 : f32 to vector<8x128xf32>
    %c0_i32 = arith.constant 0 : i32
    %24 = vector.broadcast %c0_i32 : i32 to vector<8x128xi32>
    %25 = arith.cmpi sge, %22, %24 : vector<8x128xi32>
    %c4_i32 = arith.constant 4 : i32
    %26 = vector.broadcast %c4_i32 : i32 to vector<8x128xi32>
    %27 = arith.cmpi slt, %22, %26 : vector<8x128xi32>
    %28 = arith.andi %25, %27 : vector<8x128xi1>
    %29 = vector.extract_strided_slice %21 {offsets = [0, 0], sizes = [8, 4], strides = [1, 1]} : vector<8x128xf32> to vector<8x4xf32>
    %cst_18 = arith.constant dense<0xFF800000> : vector<8xf32>
    %30 = vector.multi_reduction <maximumf>, %29, %cst_18 [1] : vector<8x4xf32> to vector<8xf32>
    %31 = vector.shape_cast %30 : vector<8xf32> to vector<8x1xf32>
    %32 = vector.shape_cast %31 : vector<8x1xf32> to vector<8x1xf32>
    %33 = vector.broadcast %32 : vector<8x1xf32> to vector<8x128xf32>
    %34 = arith.select %28, %33, %23 : vector<8x128xi1>, vector<8x128xf32>
    %c4_i32_19 = arith.constant 4 : i32
    %35 = vector.broadcast %c4_i32_19 : i32 to vector<8x128xi32>
    %36 = arith.cmpi sge, %22, %35 : vector<8x128xi32>
    %c8_i32 = arith.constant 8 : i32
    %37 = vector.broadcast %c8_i32 : i32 to vector<8x128xi32>
    %38 = arith.cmpi slt, %22, %37 : vector<8x128xi32>
    %39 = arith.andi %36, %38 : vector<8x128xi1>
    %40 = vector.extract_strided_slice %21 {offsets = [0, 4], sizes = [8, 4], strides = [1, 1]} : vector<8x128xf32> to vector<8x4xf32>
    %cst_20 = arith.constant dense<0xFF800000> : vector<8xf32>
    %41 = vector.multi_reduction <maximumf>, %40, %cst_20 [1] : vector<8x4xf32> to vector<8xf32>
    %42 = vector.shape_cast %41 : vector<8xf32> to vector<8x1xf32>
    %43 = vector.shape_cast %42 : vector<8x1xf32> to vector<8x1xf32>
    %44 = vector.broadcast %43 : vector<8x1xf32> to vector<8x128xf32>
    %45 = arith.select %39, %44, %34 : vector<8x128xi1>, vector<8x128xf32>
    %46 = arith.subf %21, %45 : vector<8x128xf32>
    %47 = math.exp %46 : vector<8x128xf32>
    %cst_21 = arith.constant 0.000000e+00 : f32
    %48 = vector.broadcast %cst_21 : f32 to vector<8x128xf32>
    %c0_i32_22 = arith.constant 0 : i32
    %49 = vector.broadcast %c0_i32_22 : i32 to vector<8x128xi32>
    %50 = arith.cmpi sge, %22, %49 : vector<8x128xi32>
    %c4_i32_23 = arith.constant 4 : i32
    %51 = vector.broadcast %c4_i32_23 : i32 to vector<8x128xi32>
    %52 = arith.cmpi slt, %22, %51 : vector<8x128xi32>
    %53 = arith.andi %50, %52 : vector<8x128xi1>
    %54 = vector.extract_strided_slice %47 {offsets = [0, 0], sizes = [8, 4], strides = [1, 1]} : vector<8x128xf32> to vector<8x4xf32>
    %cst_24 = arith.constant dense<0.000000e+00> : vector<8xf32>
    %55 = vector.multi_reduction <add>, %54, %cst_24 [1] : vector<8x4xf32> to vector<8xf32>
    %56 = vector.shape_cast %55 : vector<8xf32> to vector<8x1xf32>
    %57 = math.log %56 : vector<8x1xf32>
    %58 = vector.shape_cast %57 : vector<8x1xf32> to vector<8x1xf32>
    %59 = vector.broadcast %58 : vector<8x1xf32> to vector<8x128xf32>
    %60 = arith.select %53, %59, %48 : vector<8x128xi1>, vector<8x128xf32>
    %c4_i32_25 = arith.constant 4 : i32
    %61 = vector.broadcast %c4_i32_25 : i32 to vector<8x128xi32>
    %62 = arith.cmpi sge, %22, %61 : vector<8x128xi32>
    %c8_i32_26 = arith.constant 8 : i32
    %63 = vector.broadcast %c8_i32_26 : i32 to vector<8x128xi32>
    %64 = arith.cmpi slt, %22, %63 : vector<8x128xi32>
    %65 = arith.andi %62, %64 : vector<8x128xi1>
    %66 = vector.extract_strided_slice %47 {offsets = [0, 4], sizes = [8, 4], strides = [1, 1]} : vector<8x128xf32> to vector<8x4xf32>
    %cst_27 = arith.constant dense<0.000000e+00> : vector<8xf32>
    %67 = vector.multi_reduction <add>, %66, %cst_27 [1] : vector<8x4xf32> to vector<8xf32>
    %68 = vector.shape_cast %67 : vector<8xf32> to vector<8x1xf32>
    %69 = math.log %68 : vector<8x1xf32>
    %70 = vector.shape_cast %69 : vector<8x1xf32> to vector<8x1xf32>
    %71 = vector.broadcast %70 : vector<8x1xf32> to vector<8x128xf32>
    %72 = arith.select %65, %71, %60 : vector<8x128xi1>, vector<8x128xf32>
    %c8_i32_28 = arith.constant 8 : i32
    %73 = vector.broadcast %c8_i32_28 : i32 to vector<8x128xi32>
    %74 = arith.cmpi slt, %22, %73 : vector<8x128xi32>
    %75 = arith.subf %46, %72 : vector<8x128xf32>
    %cst_29 = arith.constant 0.000000e+00 : f32
    %76 = vector.broadcast %cst_29 : f32 to vector<8x128xf32>
    %77 = arith.select %74, %75, %76 : vector<8x128xi1>, vector<8x128xf32>
    %c0_30 = arith.constant 0 : index
    %c0_31 = arith.constant 0 : index
    %78 = vector.load %arg8[%c0_30, %c0_31] : memref<8x128xf32, #tpu.memory_space<vmem>>, vector<8x128xf32>
    tpu.vector_store %arg8[%c0_30, %c0_31], %77 {strides = array<i32>} : memref<8x128xf32, #tpu.memory_space<vmem>>, vector<8x128xf32>,
    return
  }
  func.func @transform_0(%arg0: i32) -> (i32, i32) {
    %c0_i32 = arith.constant 0 : i32
    %c0_i32_0 = arith.constant 0 : i32
    return %arg0, %c0_i32 : i32, i32
  }
  func.func @transform_1(%arg0: i32) -> (i32, i32) {
    %c0_i32 = arith.constant 0 : i32
    %c0_i32_0 = arith.constant 0 : i32
    %c0_i32_1 = arith.constant 0 : i32
    return %c0_i32, %c0_i32_0 : i32, i32
  }
  func.func @transform_2(%arg0: i32) -> (i32, i32) {
    %c0_i32 = arith.constant 0 : i32
    %c0_i32_0 = arith.constant 0 : i32
    %c0_i32_1 = arith.constant 0 : i32
    return %c0_i32, %c0_i32_0 : i32, i32
  }
  func.func @transform_3(%arg0: i32) -> (i32, i32) {
    %c0_i32 = arith.constant 0 : i32
    %c0_i32_0 = arith.constant 0 : i32
    %c0_i32_1 = arith.constant 0 : i32
    return %c0_i32, %c0_i32_0 : i32, i32
  }
  func.func @transform_4(%arg0: i32) -> (i32, i32) {
    %c0_i32 = arith.constant 0 : i32
    %c0_i32_0 = arith.constant 0 : i32
    %c0_i32_1 = arith.constant 0 : i32
    return %c0_i32, %c0_i32_0 : i32, i32
  }
  func.func @transform_5(%arg0: i32) -> (i32, i32) {
    %c0_i32 = arith.constant 0 : i32
    %c0_i32_0 = arith.constant 0 : i32
    %c0_i32_1 = arith.constant 0 : i32
    return %c0_i32, %c0_i32_0 : i32, i32
  }
  func.func @transform_6(%arg0: i32) -> (i32, i32) {
    %c0_i32 = arith.constant 0 : i32
    %c0_i32_0 = arith.constant 0 : i32
    %c0_i32_1 = arith.constant 0 : i32
    return %c0_i32, %c0_i32_0 : i32, i32
  }
  func.func @transform_7(%arg0: i32) -> (i32, i32) {
    %c0_i32 = arith.constant 0 : i32
    %c0_i32_0 = arith.constant 0 : i32
    return %arg0, %c0_i32 : i32, i32
  }
}

</mosaic_0001>

<llo_original>
// kernel: tpu_custom_call.1
$region0: #{tpu_custom_call.1}
  #allocation0 [shape = 'u32[]', space=smem, size = 0x4, offset = 0x4, fixed_abs, tag = 'smem constant byte address 0x4 - core index']
  #allocation1 [shape = 'u32[144,128]{1,0:T(1,128)}', space=vmem, size = 0x12000, scoped, tag = 'internal scratch']
  %s0 = inlined_call_operand.hbm [shape: bf16[8,32], index: 0, kind: input, shape index: {}]
  %s1 = inlined_call_operand.hbm [shape: bf16[32,32], index: 1, kind: input, shape index: {}]
  %s2 = inlined_call_operand.vmem [shape: f32[1,32], index: 2, kind: input, shape index: {}]
  %s3 = inlined_call_operand.hbm [shape: bf16[32,32], index: 3, kind: input, shape index: {}]
  %s4 = inlined_call_operand.vmem [shape: f32[1,32], index: 4, kind: input, shape index: {}]
  %s5 = inlined_call_operand.vmem [shape: bf16[32,128], index: 5, kind: input, shape index: {}]
  %s6 = inlined_call_operand.vmem [shape: f32[1,128], index: 6, kind: input, shape index: {}]
  %s7 = inlined_call_operand.hbm [shape: f32[8,128], index: 7, kind: output, shape index: {}]
  %s8 = sld [smem:[#allocation0]]
  $region50: #{tpu_custom_call.1} parent=0
    _
  %s10 = ssub.s32 1, %s8
  %s11 = scalar_select 0, %s10, %s8
  $region1: #{tpu_custom_call.1} parent=0
    #allocation2 [shape = 'u8[2048]{0}', space=vmem, size = 0x800, scoped, tag = 'input window, operand 0, single buffered']
    #allocation3 [shape = 's32[1]{0}', space=sflag, size = 0x4, scoped, tag = 'scoped memory for tpu_custom_call.1']
    #allocation4 [shape = 's32[1]{0}', space=sflag, size = 0x4, scoped, tag = 'scoped memory for tpu_custom_call.1']
    #allocation5 [shape = 'u8[8192]{0}', space=vmem, size = 0x2000, scoped, tag = 'input window, operand 1, single buffered']
    #allocation6 [shape = 's32[1]{0}', space=sflag, size = 0x4, scoped, tag = 'scoped memory for tpu_custom_call.1']
    #allocation7 [shape = 'u8[8192]{0}', space=vmem, size = 0x2000, scoped, tag = 'input window, operand 3, single buffered']
    #allocation8 [shape = 'u8[4096]{0}', space=vmem, size = 0x1000, scoped, tag = 'output window, operand 0, single buffered']
    %12 = vsyncpa [#allocation3], 0
    %13 = vsyncpa [#allocation6], 0
    %14 = vsyncpa [#allocation4], 0
    // Predicated region
    $region2: #{tpu_custom_call.1} parent=1 // pred_check
      _
    $region3: #{tpu_custom_call.1} parent=1 // pred_check_branch
      %16 = sbr.rel (0) target = $region5
    $region4: #{tpu_custom_call.1} parent=1 // pred_region
      %s18 = ssub.s32 64, 64
      %19 = vsyncadd [#allocation3], %s18
      %s21 = sshll.u32 [#allocation2], 4
      %s22 = int_to_ptr.vmem [resolvable:$true] %s21
      %24 = dma.hbm_to_vmem [thread:$0]  %s0, 64, %s22, [#allocation3]
    $region5: #{tpu_custom_call.1} parent=1 // pred_fallthru
      _
    // Predicated region
    $region6: #{tpu_custom_call.1} parent=1 // pred_check
      _
    $region7: #{tpu_custom_call.1} parent=1 // pred_check_branch
      %26 = sbr.rel (0) target = $region9
    $region8: #{tpu_custom_call.1} parent=1 // pred_region
      %s28 = ssub.s32 256, 256
      %29 = vsyncadd [#allocation6], %s28
      %s30 = sshll.u32 [#allocation5], 4
      %s31 = int_to_ptr.vmem [resolvable:$true] %s30
      %36 = dma.hbm_to_vmem [thread:$0]  %s1, 256, %s31, [#allocation6], 64, 64, 4
    $region9: #{tpu_custom_call.1} parent=1 // pred_fallthru
      _
    // Predicated region
    $region10: #{tpu_custom_call.1} parent=1 // pred_check
      _
    $region11: #{tpu_custom_call.1} parent=1 // pred_check_branch
      %38 = sbr.rel (0) target = $region13
    $region12: #{tpu_custom_call.1} parent=1 // pred_region
      _
    $region13: #{tpu_custom_call.1} parent=1 // pred_fallthru
      _
    // Predicated region
    $region14: #{tpu_custom_call.1} parent=1 // pred_check
      _
    $region15: #{tpu_custom_call.1} parent=1 // pred_check_branch
      %40 = sbr.rel (0) target = $region17
    $region16: #{tpu_custom_call.1} parent=1 // pred_region
      %s42 = ssub.s32 256, 256
      %43 = vsyncadd [#allocation6], %s42
      %s44 = sshll.u32 [#allocation7], 4
      %s45 = int_to_ptr.vmem [resolvable:$true] %s44
      %50 = dma.hbm_to_vmem [thread:$0]  %s3, 256, %s45, [#allocation6], 64, 64, 4
    $region17: #{tpu_custom_call.1} parent=1 // pred_fallthru
      _
    // Predicated region
    $region18: #{tpu_custom_call.1} parent=1 // pred_check
      _
    $region19: #{tpu_custom_call.1} parent=1 // pred_check_branch
      %52 = sbr.rel (0) target = $region21
    $region20: #{tpu_custom_call.1} parent=1 // pred_region
      _
    $region21: #{tpu_custom_call.1} parent=1 // pred_fallthru
      _
    // Predicated region
    $region22: #{tpu_custom_call.1} parent=1 // pred_check
      _
    $region23: #{tpu_custom_call.1} parent=1 // pred_check_branch
      %54 = sbr.rel (0) target = $region25
    $region24: #{tpu_custom_call.1} parent=1 // pred_region
      _
    $region25: #{tpu_custom_call.1} parent=1 // pred_fallthru
      _
    // Predicated region
    $region26: #{tpu_custom_call.1} parent=1 // pred_check
      _
    $region27: #{tpu_custom_call.1} parent=1 // pred_check_branch
      %56 = sbr.rel (0) target = $region29
    $region28: #{tpu_custom_call.1} parent=1 // pred_region
      _
    $region29: #{tpu_custom_call.1} parent=1 // pred_fallthru
      _
    // Predicated region
    $region30: #{tpu_custom_call.1} parent=1 // pred_check
      _
    $region31: #{tpu_custom_call.1} parent=1 // pred_check_branch
      %58 = sbr.rel (0) target = $region33
    $region32: #{tpu_custom_call.1} parent=1 // pred_region
      %59 = dma.done [#allocation3], 64
    $region33: #{tpu_custom_call.1} parent=1 // pred_fallthru
      _
    // Predicated region
    $region34: #{tpu_custom_call.1} parent=1 // pred_check
      _
    $region35: #{tpu_custom_call.1} parent=1 // pred_check_branch
      %61 = sbr.rel (0) target = $region37
    $region36: #{tpu_custom_call.1} parent=1 // pred_region
      %62 = dma.done [#allocation6], 256
    $region37: #{tpu_custom_call.1} parent=1 // pred_fallthru
      _
    // Predicated region
    $region38: #{tpu_custom_call.1} parent=1 // pred_check
      _
    $region39: #{tpu_custom_call.1} parent=1 // pred_check_branch
      %64 = sbr.rel (0) target = $region41
    $region40: #{tpu_custom_call.1} parent=1 // pred_region
      %65 = dma.done [#allocation6], 256
    $region41: #{tpu_custom_call.1} parent=1 // pred_fallthru
      _
    %v67 = vld [vmem:[#allocation2] sm:$0xf]
    %v68 = vld [vmem:[#allocation5] sm:$0xf]
    %v69 = vld [vmem:[#allocation5 + $0x4] sm:$0xf]
    %v70 = vld [vmem:[#allocation5 + $0x8] sm:$0xf]
    %v71 = vld [vmem:[#allocation5 + $0xc] sm:$0xf]
    %v72 = vld [vmem:[%s2] sm:$0x1]
    %v74 = vlaneseq
    %v75 = vshrl.u32 %v74, 7
    %v76 = vsub.s32 0, %v75
    %v77 = vrot.slane %v72, %v76
    %v83 = vunpack.c.l.b16 %v68
    %v84 = vunpack.c.l.b16 %v69
    %v85 = vunpack.c.l.b16 %v70
    %v86 = vunpack.c.l.b16 %v71
    %v87 = vpack.c.b16 %v84, %v83
    %v88 = vpack.c.b16 %v86, %v85
    %vm91 = vcmask 261120
    %v93 = vsel %vm91, %v67, 0
    %95 = vmatprep.subr.bf16.mxu0 0
    %96 = vmatpush1.bf16.msra.mxu0 %v87
    %97 = vmatprep.subr.bf16.mxu0 0
    %98 = vmatpush1.bf16.msra.mxu0 %v88
    %99 = vmatprep.subr.bf16.mxu0 0
    %100 = vmatpush1.bf16.msra.mxu0 0
    %101 = vmatprep.subr.bf16.mxu0 0
    %102 = vmatpush1.bf16.msra.mxu0 0
    %103 = vmatprep.subr.bf16.mxu0 0
    %104 = vmatpush1.bf16.msra.mxu0 0
    %105 = vmatprep.subr.bf16.mxu0 0
    %106 = vmatpush1.bf16.msra.mxu0 0
    %107 = vmatprep.subr.bf16.mxu0 0
    %108 = vmatpush1.bf16.msra.mxu0 0
    %109 = vmatprep.subr.bf16.mxu0 0
    %110 = vmatpush1.bf16.msra.mxu0 0
    %111 = vmatprep.subr.bf16.mxu0 0
    %112 = vmatpush1.bf16.msra.mxu0 0
    %113 = vmatprep.subr.bf16.mxu0 0
    %114 = vmatpush1.bf16.msra.mxu0 0
    %115 = vmatprep.subr.bf16.mxu0 0
    %116 = vmatpush1.bf16.msra.mxu0 0
    %117 = vmatprep.subr.bf16.mxu0 0
    %118 = vmatpush1.bf16.msra.mxu0 0
    %119 = vmatprep.subr.bf16.mxu0 0
    %120 = vmatpush1.bf16.msra.mxu0 0
    %121 = vmatprep.subr.bf16.mxu0 0
    %122 = vmatpush1.bf16.msra.mxu0 0
    %123 = vmatprep.subr.bf16.mxu0 0
    %124 = vmatpush1.bf16.msra.mxu0 0
    %125 = vmatprep.subr.bf16.mxu0 0
    %126 = vmatpush1.bf16.msra.mxu0 0
    %127 = vmatprep.mubr.bf16.mxu0 0
    %128 = vmatmul.mubr.bf16.gmra.mrb[0].mxu0 %v93
    %v129 = vpop.f32.mrb[0].mxu0
    %v130 = vadd.f32 %v77, %v129
    %v131 = vpop.f32.mrb[0].mxu0
    %v132 = vpop.f32.mrb[0].mxu0
    %v133 = vpop.f32.mrb[0].mxu0
    %134 = vdwg.mxu0
    %v135 = vmax.f32 %v130, 0.0
    %v136 = vld [vmem:[#allocation7] sm:$0xf]
    %v137 = vld [vmem:[#allocation7 + $0x4] sm:$0xf]
    %v138 = vld [vmem:[#allocation7 + $0x8] sm:$0xf]
    %v139 = vld [vmem:[#allocation7 + $0xc] sm:$0xf]
    %v140 = vld [vmem:[%s4] sm:$0x1]
    %v141 = vpack.c.bf16 %v135, %v135
    %v143 = vlaneseq
    %v144 = vshrl.u32 %v143, 7
    %v145 = vsub.s32 0, %v144
    %v146 = vrot.slane %v140, %v145
    %v152 = vunpack.c.l.b16 %v136
    %v153 = vunpack.c.l.b16 %v137
    %v154 = vunpack.c.l.b16 %v138
    %v155 = vunpack.c.l.b16 %v139
    %v156 = vpack.c.b16 %v153, %v152
    %v157 = vpack.c.b16 %v155, %v154
    %v161 = vsel %vm91, %v141, 0
    %163 = vmatprep.subr.bf16.mxu0 0
    %164 = vmatpush1.bf16.msra.mxu0 %v156
    %165 = vmatprep.subr.bf16.mxu0 0
    %166 = vmatpush1.bf16.msra.mxu0 %v157
    %167 = vmatprep.subr.bf16.mxu0 0
    %168 = vmatpush1.bf16.msra.mxu0 0
    %169 = vmatprep.subr.bf16.mxu0 0
    %170 = vmatpush1.bf16.msra.mxu0 0
    %171 = vmatprep.subr.bf16.mxu0 0
    %172 = vmatpush1.bf16.msra.mxu0 0
    %173 = vmatprep.subr.bf16.mxu0 0
    %174 = vmatpush1.bf16.msra.mxu0 0
    %175 = vmatprep.subr.bf16.mxu0 0
    %176 = vmatpush1.bf16.msra.mxu0 0
    %177 = vmatprep.subr.bf16.mxu0 0
    %178 = vmatpush1.bf16.msra.mxu0 0
    %179 = vmatprep.subr.bf16.mxu0 0
    %180 = vmatpush1.bf16.msra.mxu0 0
    %181 = vmatprep.subr.bf16.mxu0 0
    %182 = vmatpush1.bf16.msra.mxu0 0
    %183 = vmatprep.subr.bf16.mxu0 0
    %184 = vmatpush1.bf16.msra.mxu0 0
    %185 = vmatprep.subr.bf16.mxu0 0
    %186 = vmatpush1.bf16.msra.mxu0 0
    %187 = vmatprep.subr.bf16.mxu0 0
    %188 = vmatpush1.bf16.msra.mxu0 0
    %189 = vmatprep.subr.bf16.mxu0 0
    %190 = vmatpush1.bf16.msra.mxu0 0
    %191 = vmatprep.subr.bf16.mxu0 0
    %192 = vmatpush1.bf16.msra.mxu0 0
    %193 = vmatprep.subr.bf16.mxu0 0
    %194 = vmatpush1.bf16.msra.mxu0 0
    %195 = vmatprep.mubr.bf16.mxu0 0
    %196 = vmatmul.mubr.bf16.gmra.mrb[0].mxu0 %v161
    %v197 = vpop.f32.mrb[0].mxu0
    %v198 = vadd.f32 %v146, %v197
    %v199 = vpop.f32.mrb[0].mxu0
    %v200 = vpop.f32.mrb[0].mxu0
    %v201 = vpop.f32.mrb[0].mxu0
    %202 = vdwg.mxu0
    %v203 = vmax.f32 %v198, 0.0
    %v204 = vld [vmem:[%s5] sm:$0xf]
    %v205 = vld [vmem:[%s5 + $0x4] sm:$0xf]
    %v206 = vld [vmem:[%s5 + $0x8] sm:$0xf]
    %v207 = vld [vmem:[%s5 + $0xc] sm:$0xf]
    %v208 = vld [vmem:[%s6] sm:$0x1]
    %v209 = vpack.c.bf16 %v203, %v203
    %v211 = vlaneseq
    %v212 = vshrl.u32 %v211, 7
    %v213 = vsub.s32 0, %v212
    %v214 = vrot.slane %v208, %v213
    %v220 = vunpack.c.l.b16 %v204
    %v221 = vunpack.c.l.b16 %v205
    %v222 = vunpack.c.l.b16 %v206
    %v223 = vunpack.c.l.b16 %v207
    %v224 = vpack.c.b16 %v221, %v220
    %v225 = vpack.c.b16 %v223, %v222
    %v229 = vsel %vm91, %v209, 0
    %231 = vmatprep.subr.bf16.mxu0 0
    %232 = vmatpush1.bf16.msra.mxu0 %v224
    %233 = vmatprep.subr.bf16.mxu0 0
    %234 = vmatpush1.bf16.msra.mxu0 %v225
    %235 = vmatprep.subr.bf16.mxu0 0
    %236 = vmatpush1.bf16.msra.mxu0 0
    %237 = vmatprep.subr.bf16.mxu0 0
    %238 = vmatpush1.bf16.msra.mxu0 0
    %239 = vmatprep.subr.bf16.mxu0 0
    %240 = vmatpush1.bf16.msra.mxu0 0
    %241 = vmatprep.subr.bf16.mxu0 0
    %242 = vmatpush1.bf16.msra.mxu0 0
    %243 = vmatprep.subr.bf16.mxu0 0
    %244 = vmatpush1.bf16.msra.mxu0 0
    %245 = vmatprep.subr.bf16.mxu0 0
    %246 = vmatpush1.bf16.msra.mxu0 0
    %247 = vmatprep.subr.bf16.mxu0 0
    %248 = vmatpush1.bf16.msra.mxu0 0
    %249 = vmatprep.subr.bf16.mxu0 0
    %250 = vmatpush1.bf16.msra.mxu0 0
    %251 = vmatprep.subr.bf16.mxu0 0
    %252 = vmatpush1.bf16.msra.mxu0 0
    %253 = vmatprep.subr.bf16.mxu0 0
    %254 = vmatpush1.bf16.msra.mxu0 0
    %255 = vmatprep.subr.bf16.mxu0 0
    %256 = vmatpush1.bf16.msra.mxu0 0
    %257 = vmatprep.subr.bf16.mxu0 0
    %258 = vmatpush1.bf16.msra.mxu0 0
    %259 = vmatprep.subr.bf16.mxu0 0
    %260 = vmatpush1.bf16.msra.mxu0 0
    %261 = vmatprep.subr.bf16.mxu0 0
    %262 = vmatpush1.bf16.msra.mxu0 0
    %263 = vmatprep.mubr.bf16.mxu0 0
    %264 = vmatmul.mubr.bf16.gmra.mrb[0].mxu0 %v229
    %v265 = vpop.f32.mrb[0].mxu0
    %v266 = vadd.f32 %v214, %v265
    %v267 = vpop.f32.mrb[0].mxu0
    %v268 = vpop.f32.mrb[0].mxu0
    %v269 = vpop.f32.mrb[0].mxu0
    %270 = vdwg.mxu0
    %v271 = vlaneseq
    %v272 = vand.u32 %v271, 127
    %vm273 = vcmp.ge.s32.totalorder %v272, 0
    %vm274 = vcmp.lt.s32.totalorder %v272, 4
    %vm275 = vmand %vm273, %vm274
    %vm276 = vcmask 31744
    %v277 = vsel %vm276, %v266, -inf
    %278 = vmax.xlane.f32.xlu0 %v277
    %v279 = vpop.xlane.xlu0 %278
    %v280 = vsel %vm275, %v279, 0.0
    %vm281 = vcmp.ge.s32.totalorder %v272, 4
    %vm282 = vcmp.lt.s32.totalorder %v272, 8
    %vm283 = vmand %vm281, %vm282
    %vm284 = vcmask 64544
    %v285 = vsel %vm284, %v266, -inf
    %286 = vmax.xlane.f32.xlu0 %v285
    %v287 = vpop.xlane.xlu0 %286
    %v288 = vsel %vm283, %v287, %v280
    %v289 = vsub.f32 %v266, %v288
    %v290 = vmul.f32 %v289, 1.442695
    %v291 = vpow.pop %v290
    %v292 = vsel %vm276, %v291, 0.0
    %293 = vadd.xlane.f32.xlu0 %v292
    %v294 = vpop.xlane.xlu0 %293
    %v295 = vlog2.pop %v294
    %v296 = vmul.f32 %v295, 0.6931472
    %v297 = vsel %vm275, %v296, 0.0
    %299 = vrot.lane.b32.xlu0 %v291, 124
    %v300 = vpop.permute.xlu0 %299
    %v302 = vsel %vm276, %v300, 0.0
    %303 = vadd.xlane.f32.xlu0 %v302
    %v304 = vpop.xlane.xlu0 %303
    %v305 = vlog2.pop %v304
    %v306 = vmul.f32 %v305, 0.6931472
    %v307 = vsel %vm283, %v306, %v297
    %v308 = vsub.f32 %v289, %v307
    %v309 = vsel %vm282, %v308, 0.0
    %310 = vst [vmem:[#allocation8] sm:$0xff] %v309
    // Predicated region
    $region42: #{tpu_custom_call.1} parent=1 // pred_check
      _
    $region43: #{tpu_custom_call.1} parent=1 // pred_check_branch
      %312 = sbr.rel (0) target = $region45
    $region44: #{tpu_custom_call.1} parent=1 // pred_region
      %s314 = ssub.s32 128, 128
      %315 = vsyncadd [#allocation4], %s314
      %s317 = sshll.u32 [#allocation8], 4
      %s318 = int_to_ptr.vmem [resolvable:$true] %s317
      %320 = dma.vmem_to_hbm [thread:$0]  %s318, 128, %s7, [#allocation4]
    $region45: #{tpu_custom_call.1} parent=1 // pred_fallthru
      _
    // Predicated region
    $region46: #{tpu_custom_call.1} parent=1 // pred_check
      _
    $region47: #{tpu_custom_call.1} parent=1 // pred_check_branch
      %322 = sbr.rel (0) target = $region49
    $region48: #{tpu_custom_call.1} parent=1 // pred_region
      %323 = dma.done [#allocation4], 128
    $region49: #{tpu_custom_call.1} parent=1 // pred_fallthru
      _
    %324 = vsyncpa [#allocation3], 1
    %325 = vsyncpa [#allocation6], 1
    %326 = vsyncpa [#allocation4], 1

</llo_original>
